<compile_context>
chip_gen: v7x
topology: tpu7x:2x2x1
jax: 0.10.0
libtpu: 0.0.40
codegen_flags: <defaults>
</compile_context>

<pallas_src>
import functools
import math

import jax
import jax.numpy as jnp
import numpy as np
from jax import lax
from jax.experimental import pallas as pl
from jax.experimental.pallas import tpu as pltpu

EPS = 1e-7
LANE = 128
MAX_TILE_ROWS = 256          # 256 * 128 * 4 B = 128 KiB per f32 plane per tile


def _pronet_kernel(scal_ref, depth_ref, cam_ref, proj_ref, *, height, width):
    """Grid = (batch, pixel-tile). One step covers an (Rt, 128) pixel plane."""
    depth = depth_ref[0]                                  # (Rt, 128)
    rt = depth.shape[0]

    # ---- per-batch camera scalars from SMEM (21 per batch) -----------------
    base = pl.program_id(0) * 21
    s = [scal_ref[base + i] for i in range(21)]
    (a00, a01, a02, a10, a11, a12, a20, a21, a22,
     p00, p01, p02, p03, p10, p11, p12, p13, p20, p21, p22, p23) = s

    # ---- pixel grid generated in-kernel (no HBM constant) ------------------
    row = lax.broadcasted_iota(jnp.int32, (rt, LANE), 0).astype(jnp.float32)
    lane = lax.broadcasted_iota(jnp.int32, (rt, LANE), 1).astype(jnp.float32)
    tile_base = (pl.program_id(1) * (rt * LANE)).astype(jnp.float32)
    p = tile_base + row * float(LANE) + lane              # flat pixel index
    # y = p // W, x = p % W via float math (exact for images < ~4 MPix).
    y = jnp.floor((p + 0.5) * (1.0 / width))
    x = p - y * width

    # ---- BackprojectDepth: cam = depth * (inv_K[:3,:3] @ [x, y, 1]) --------
    cx = depth * (a00 * x + a01 * y + a02)
    cy = depth * (a10 * x + a11 * y + a12)
    cz = depth * (a20 * x + a21 * y + a22)
    cam_ref[0, 0] = cx
    cam_ref[0, 1] = cy
    cam_ref[0, 2] = cz
    cam_ref[0, 3] = jnp.ones_like(depth)

    # ---- Project3D: proj = (K@T)[:3,:] @ [cam, 1]; normalise to [-1, 1] ----
    qx = p00 * cx + p01 * cy + p02 * cz + p03
    qy = p10 * cx + p11 * cy + p12 * cz + p13
    qz = p20 * cx + p21 * cy + p22 * cz + p23
    inv_z = pl.reciprocal(qz + EPS, approx=False)  # approx=True also viable
    proj_ref[0, 0] = qx * inv_z * (2.0 / (width - 1.0)) - 1.0
    proj_ref[0, 1] = qy * inv_z * (2.0 / (height - 1.0)) - 1.0


def _choose_tiling(n):
    """Return (n_pad, total_rows, rows_per_tile) for an N-pixel image."""
    if n % LANE == 0 and (n // LANE) <= MAX_TILE_ROWS:
        return n, n // LANE, n // LANE          # single pixel-tile, full rows
    n_pad = -(-n // (LANE * 8)) * (LANE * 8)    # rows become a multiple of 8
    rows = n_pad // LANE
    for cand in (MAX_TILE_ROWS, 128, 64, 32, 16, 8):
        if rows % cand == 0:
            return n_pad, rows, cand
    return n_pad, rows, 8                       # unreachable (rows % 8 == 0)


def pronet_forward(depth, K, inv_K, T, height, width):
    """depth: (B,1,H,W) f32; K, inv_K, T: (B,4,4) f32.
    Returns (cam_points (B,4,H*W), pix_coords (B,H,W,2)) — matching ProNet."""
    B = depth.shape[0]
    N = height * width
    n_pad, rows, rt = _choose_tiling(N)
    n_tiles = rows // rt

    # Per-batch camera scalars: inv_K[:3,:3] (9) and P = (K @ T)[:3,:4] (12).
    A = inv_K.astype(jnp.float32)[:, :3, :3].reshape(B, 9)
    P = jnp.einsum("bij,bjk->bik", K.astype(jnp.float32),
                   T.astype(jnp.float32))[:, :3, :4].reshape(B, 12)
    scal = jnp.concatenate([A, P], axis=1).reshape(-1)      # (B*21,) -> SMEM

    depth_flat = depth.reshape(B, N).astype(jnp.float32)
    if n_pad != N:
        depth_flat = jnp.pad(depth_flat, ((0, 0), (0, n_pad - N)),
                             constant_values=1.0)
    depth_tiles = depth_flat.reshape(B, rows, LANE)

    kernel = functools.partial(_pronet_kernel, height=float(height),
                               width=float(width))

    cam, proj = pl.pallas_call(
        kernel,
        out_shape=(
            jax.ShapeDtypeStruct((B, 4, rows, LANE), jnp.float32),
            jax.ShapeDtypeStruct((B, 2, rows, LANE), jnp.float32),
        ),
        grid=(B, n_tiles),
        in_specs=[
            pl.BlockSpec(memory_space=pltpu.MemorySpace.SMEM),     # camera scalars
            pl.BlockSpec((1, rt, LANE), lambda b, t: (b, t, 0)),   # depth tile
        ],
        out_specs=(
            pl.BlockSpec((1, 4, rt, LANE), lambda b, t: (b, 0, t, 0)),  # cam
            pl.BlockSpec((1, 2, rt, LANE), lambda b, t: (b, 0, t, 0)),  # proj
        ),
        compiler_params=pltpu.CompilerParams(
            dimension_semantics=("parallel", "parallel")),
    )(scal, depth_tiles)

    cam_points = cam.reshape(B, 4, n_pad)[:, :, :N]
    # Layout glue only (no compute). Keeping channel-first and fusing the
    # permute into the consumer (e.g. grid_sample) would avoid this HBM pass,
    # but the module spec requires (B, H, W, 2).
    pix = proj.reshape(B, 2, n_pad)[:, :, :N]
    pix = pix.reshape(B, 2, height, width).transpose(0, 2, 3, 1)
    return cam_points, pix


def pronet_reference(depth, K, inv_K, T, height, width):
    """Pure-JAX reference mirroring the PyTorch module."""
    B = depth.shape[0]
    N = height * width
    xs, ys = jnp.meshgrid(jnp.arange(width, dtype=jnp.float32),
                          jnp.arange(height, dtype=jnp.float32), indexing="xy")
    pix = jnp.stack([xs.reshape(-1), ys.reshape(-1),
                     jnp.ones((N,), jnp.float32)], axis=0)
    pix = jnp.broadcast_to(pix, (B, 3, N))
    cam = jnp.einsum("bij,bjn->bin", inv_K[:, :3, :3], pix)
    cam = depth.reshape(B, 1, N) * cam
    cam = jnp.concatenate([cam, jnp.ones((B, 1, N), jnp.float32)], axis=1)
    P = jnp.einsum("bij,bjk->bik", K, T)[:, :3, :]
    cp = jnp.einsum("bij,bjn->bin", P, cam)
    pix2 = cp[:, :2, :] / (cp[:, 2:3, :] + EPS)
    pix2 = pix2.reshape(B, 2, height, width).transpose(0, 2, 3, 1)
    scale = jnp.array([width - 1.0, height - 1.0], jnp.float32)
    pix2 = (pix2 / scale - 0.5) * 2.0
    return cam, pix2


if __name__ == "__main__":
    B, H, W = 2, 16, 16
    key = jax.random.PRNGKey(0)

    depth = jax.random.uniform(key, (B, 1, H, W), jnp.float32,
                               minval=0.5, maxval=10.0)

    # Deterministic camera intrinsics / pose ("parameters" built in-script).
    fx, fy = 0.58 * W, 1.92 * H
    cx, cy = 0.5 * W, 0.5 * H
    K_single = jnp.array([[fx, 0.0, cx, 0.0],
                          [0.0, fy, cy, 0.0],
                          [0.0, 0.0, 1.0, 0.0],
                          [0.0, 0.0, 0.0, 1.0]], jnp.float32)
    Kmat = jnp.tile(K_single[None], (B, 1, 1))
    inv_K = jnp.linalg.inv(Kmat)

    th = 0.05
    T_single = jnp.array([[math.cos(th), -math.sin(th), 0.0, 0.10],
                          [math.sin(th),  math.cos(th), 0.0, -0.05],
                          [0.0,           0.0,          1.0, 0.20],
                          [0.0,           0.0,          0.0, 1.0]], jnp.float32)
    Tmat = jnp.tile(T_single[None], (B, 1, 1))

    cam, f = pronet_forward(depth, Kmat, inv_K, Tmat, H, W)
    jax.block_until_ready((cam, f))

    cam_ref, f_ref = pronet_reference(depth, Kmat, inv_K, Tmat, H, W)
    assert cam.shape == (B, 4, H * W) and f.shape == (B, H, W, 2)
    np.testing.assert_allclose(np.asarray(cam), np.asarray(cam_ref),
                               rtol=2e-3, atol=2e-3)
    np.testing.assert_allclose(np.asarray(f), np.asarray(f_ref),
                               rtol=2e-3, atol=2e-3)

    print("KERNEL_OK")
</pallas_src>

<mosaic_0001>
module attributes {stable_mosaic.version = 11 : i64} {
  func.func @_pronet_kernel(%arg0: i32, %arg1: i32, %arg2: memref<42xf32, #tpu.memory_space<smem>>, %arg3: memref<1x2x128xf32, #tpu.memory_space<vmem>>, %arg4: memref<1x4x2x128xf32, #tpu.memory_space<vmem>>, %arg5: memref<1x2x2x128xf32, #tpu.memory_space<vmem>>) attributes {dimension_semantics = [#tpu.dimension_semantics<parallel>, #tpu.dimension_semantics<parallel>], iteration_bounds = array<i64: 2, 1>, scalar_prefetch = 0 : i64, scratch_operands = 0 : i64, tpu.core_type = #tpu.core_type<tc>, window_params = [{transform_indices = @transform_0, window_bounds = array<i64: 42>}, {transform_indices = @transform_1, window_bounds = array<i64: 1, 2, 128>}, {transform_indices = @transform_2, window_bounds = array<i64: 1, 4, 2, 128>}, {transform_indices = @transform_3, window_bounds = array<i64: 1, 2, 2, 128>}]} {
    %c0 = arith.constant 0 : index
    %c0_0 = arith.constant 0 : index
    %c0_1 = arith.constant 0 : index
    %0 = vector.load %arg3[%c0, %c0_0, %c0_1] : memref<1x2x128xf32, #tpu.memory_space<vmem>>, vector<1x2x128xf32>
    %1 = vector.shape_cast %0 : vector<1x2x128xf32> to vector<2x128xf32>
    %c21_i32 = arith.constant 21 : i32
    %2 = arith.muli %arg0, %c21_i32 : i32
    %c0_i32 = arith.constant 0 : i32
    %3 = arith.addi %2, %c0_i32 : i32
    %4 = arith.index_cast %3 : i32 to index
    %5 = memref.load %arg2[%4] : memref<42xf32, #tpu.memory_space<smem>>
    %c1_i32 = arith.constant 1 : i32
    %6 = arith.addi %2, %c1_i32 : i32
    %7 = arith.index_cast %6 : i32 to index
    %8 = memref.load %arg2[%7] : memref<42xf32, #tpu.memory_space<smem>>
    %c2_i32 = arith.constant 2 : i32
    %9 = arith.addi %2, %c2_i32 : i32
    %10 = arith.index_cast %9 : i32 to index
    %11 = memref.load %arg2[%10] : memref<42xf32, #tpu.memory_space<smem>>
    %c3_i32 = arith.constant 3 : i32
    %12 = arith.addi %2, %c3_i32 : i32
    %13 = arith.index_cast %12 : i32 to index
    %14 = memref.load %arg2[%13] : memref<42xf32, #tpu.memory_space<smem>>
    %c4_i32 = arith.constant 4 : i32
    %15 = arith.addi %2, %c4_i32 : i32
    %16 = arith.index_cast %15 : i32 to index
    %17 = memref.load %arg2[%16] : memref<42xf32, #tpu.memory_space<smem>>
    %c5_i32 = arith.constant 5 : i32
    %18 = arith.addi %2, %c5_i32 : i32
    %19 = arith.index_cast %18 : i32 to index
    %20 = memref.load %arg2[%19] : memref<42xf32, #tpu.memory_space<smem>>
    %c6_i32 = arith.constant 6 : i32
    %21 = arith.addi %2, %c6_i32 : i32
    %22 = arith.index_cast %21 : i32 to index
    %23 = memref.load %arg2[%22] : memref<42xf32, #tpu.memory_space<smem>>
    %c7_i32 = arith.constant 7 : i32
    %24 = arith.addi %2, %c7_i32 : i32
    %25 = arith.index_cast %24 : i32 to index
    %26 = memref.load %arg2[%25] : memref<42xf32, #tpu.memory_space<smem>>
    %c8_i32 = arith.constant 8 : i32
    %27 = arith.addi %2, %c8_i32 : i32
    %28 = arith.index_cast %27 : i32 to index
    %29 = memref.load %arg2[%28] : memref<42xf32, #tpu.memory_space<smem>>
    %c9_i32 = arith.constant 9 : i32
    %30 = arith.addi %2, %c9_i32 : i32
    %31 = arith.index_cast %30 : i32 to index
    %32 = memref.load %arg2[%31] : memref<42xf32, #tpu.memory_space<smem>>
    %c10_i32 = arith.constant 10 : i32
    %33 = arith.addi %2, %c10_i32 : i32
    %34 = arith.index_cast %33 : i32 to index
    %35 = memref.load %arg2[%34] : memref<42xf32, #tpu.memory_space<smem>>
    %c11_i32 = arith.constant 11 : i32
    %36 = arith.addi %2, %c11_i32 : i32
    %37 = arith.index_cast %36 : i32 to index
    %38 = memref.load %arg2[%37] : memref<42xf32, #tpu.memory_space<smem>>
    %c12_i32 = arith.constant 12 : i32
    %39 = arith.addi %2, %c12_i32 : i32
    %40 = arith.index_cast %39 : i32 to index
    %41 = memref.load %arg2[%40] : memref<42xf32, #tpu.memory_space<smem>>
    %c13_i32 = arith.constant 13 : i32
    %42 = arith.addi %2, %c13_i32 : i32
    %43 = arith.index_cast %42 : i32 to index
    %44 = memref.load %arg2[%43] : memref<42xf32, #tpu.memory_space<smem>>
    %c14_i32 = arith.constant 14 : i32
    %45 = arith.addi %2, %c14_i32 : i32
    %46 = arith.index_cast %45 : i32 to index
    %47 = memref.load %arg2[%46] : memref<42xf32, #tpu.memory_space<smem>>
    %c15_i32 = arith.constant 15 : i32
    %48 = arith.addi %2, %c15_i32 : i32
    %49 = arith.index_cast %48 : i32 to index
    %50 = memref.load %arg2[%49] : memref<42xf32, #tpu.memory_space<smem>>
    %c16_i32 = arith.constant 16 : i32
    %51 = arith.addi %2, %c16_i32 : i32
    %52 = arith.index_cast %51 : i32 to index
    %53 = memref.load %arg2[%52] : memref<42xf32, #tpu.memory_space<smem>>
    %c17_i32 = arith.constant 17 : i32
    %54 = arith.addi %2, %c17_i32 : i32
    %55 = arith.index_cast %54 : i32 to index
    %56 = memref.load %arg2[%55] : memref<42xf32, #tpu.memory_space<smem>>
    %c18_i32 = arith.constant 18 : i32
    %57 = arith.addi %2, %c18_i32 : i32
    %58 = arith.index_cast %57 : i32 to index
    %59 = memref.load %arg2[%58] : memref<42xf32, #tpu.memory_space<smem>>
    %c19_i32 = arith.constant 19 : i32
    %60 = arith.addi %2, %c19_i32 : i32
    %61 = arith.index_cast %60 : i32 to index
    %62 = memref.load %arg2[%61] : memref<42xf32, #tpu.memory_space<smem>>
    %c20_i32 = arith.constant 20 : i32
    %63 = arith.addi %2, %c20_i32 : i32
    %64 = arith.index_cast %63 : i32 to index
    %65 = memref.load %arg2[%64] : memref<42xf32, #tpu.memory_space<smem>>
    %66 = tpu.iota {dimensions = array<i32: 0>} : vector<2x128xi32>
    %67 = arith.sitofp %66 : vector<2x128xi32> to vector<2x128xf32>
    %68 = tpu.iota {dimensions = array<i32: 1>} : vector<2x128xi32>
    %69 = arith.sitofp %68 : vector<2x128xi32> to vector<2x128xf32>
    %c256_i32 = arith.constant 256 : i32
    %70 = arith.muli %arg1, %c256_i32 : i32
    %71 = arith.sitofp %70 : i32 to f32
    %cst = arith.constant 1.280000e+02 : f32
    %72 = vector.broadcast %cst : f32 to vector<2x128xf32>
    %73 = arith.mulf %67, %72 : vector<2x128xf32>
    %74 = vector.broadcast %71 : f32 to vector<2x128xf32>
    %75 = arith.addf %74, %73 : vector<2x128xf32>
    %76 = arith.addf %75, %69 : vector<2x128xf32>
    %cst_2 = arith.constant 5.000000e-01 : f32
    %77 = vector.broadcast %cst_2 : f32 to vector<2x128xf32>
    %78 = arith.addf %76, %77 : vector<2x128xf32>
    %cst_3 = arith.constant 6.250000e-02 : f32
    %79 = vector.broadcast %cst_3 : f32 to vector<2x128xf32>
    %80 = arith.mulf %78, %79 : vector<2x128xf32>
    %81 = math.floor %80 : vector<2x128xf32>
    %cst_4 = arith.constant 1.600000e+01 : f32
    %82 = vector.broadcast %cst_4 : f32 to vector<2x128xf32>
    %83 = arith.mulf %81, %82 : vector<2x128xf32>
    %84 = arith.subf %76, %83 : vector<2x128xf32>
    %85 = vector.broadcast %5 : f32 to vector<2x128xf32>
    %86 = arith.mulf %85, %84 : vector<2x128xf32>
    %87 = vector.broadcast %8 : f32 to vector<2x128xf32>
    %88 = arith.mulf %87, %81 : vector<2x128xf32>
    %89 = arith.addf %86, %88 : vector<2x128xf32>
    %90 = vector.broadcast %11 : f32 to vector<2x128xf32>
    %91 = arith.addf %89, %90 : vector<2x128xf32>
    %92 = arith.mulf %1, %91 : vector<2x128xf32>
    %93 = vector.broadcast %14 : f32 to vector<2x128xf32>
    %94 = arith.mulf %93, %84 : vector<2x128xf32>
    %95 = vector.broadcast %17 : f32 to vector<2x128xf32>
    %96 = arith.mulf %95, %81 : vector<2x128xf32>
    %97 = arith.addf %94, %96 : vector<2x128xf32>
    %98 = vector.broadcast %20 : f32 to vector<2x128xf32>
    %99 = arith.addf %97, %98 : vector<2x128xf32>
    %100 = arith.mulf %1, %99 : vector<2x128xf32>
    %101 = vector.broadcast %23 : f32 to vector<2x128xf32>
    %102 = arith.mulf %101, %84 : vector<2x128xf32>
    %103 = vector.broadcast %26 : f32 to vector<2x128xf32>
    %104 = arith.mulf %103, %81 : vector<2x128xf32>
    %105 = arith.addf %102, %104 : vector<2x128xf32>
    %106 = vector.broadcast %29 : f32 to vector<2x128xf32>
    %107 = arith.addf %105, %106 : vector<2x128xf32>
    %108 = arith.mulf %1, %107 : vector<2x128xf32>
    %c0_5 = arith.constant 0 : index
    %c0_6 = arith.constant 0 : index
    %c0_7 = arith.constant 0 : index
    %c0_8 = arith.constant 0 : index
    %109 = vector.load %arg4[%c0_5, %c0_6, %c0_7, %c0_8] : memref<1x4x2x128xf32, #tpu.memory_space<vmem>>, vector<1x1x2x128xf32>
    %110 = vector.shape_cast %109 : vector<1x1x2x128xf32> to vector<2x128xf32>
    %111 = vector.shape_cast %92 : vector<2x128xf32> to vector<1x1x2x128xf32>
    tpu.vector_store %arg4[%c0_5, %c0_6, %c0_7, %c0_8], %111 {strides = array<i32>} : memref<1x4x2x128xf32, #tpu.memory_space<vmem>>, vector<1x1x2x128xf32>,
    %c0_9 = arith.constant 0 : index
    %c1 = arith.constant 1 : index
    %c0_10 = arith.constant 0 : index
    %c0_11 = arith.constant 0 : index
    %112 = vector.load %arg4[%c0_9, %c1, %c0_10, %c0_11] : memref<1x4x2x128xf32, #tpu.memory_space<vmem>>, vector<1x1x2x128xf32>
    %113 = vector.shape_cast %112 : vector<1x1x2x128xf32> to vector<2x128xf32>
    %114 = vector.shape_cast %100 : vector<2x128xf32> to vector<1x1x2x128xf32>
    tpu.vector_store %arg4[%c0_9, %c1, %c0_10, %c0_11], %114 {strides = array<i32>} : memref<1x4x2x128xf32, #tpu.memory_space<vmem>>, vector<1x1x2x128xf32>,
    %c0_12 = arith.constant 0 : index
    %c2 = arith.constant 2 : index
    %c0_13 = arith.constant 0 : index
    %c0_14 = arith.constant 0 : index
    %115 = vector.load %arg4[%c0_12, %c2, %c0_13, %c0_14] : memref<1x4x2x128xf32, #tpu.memory_space<vmem>>, vector<1x1x2x128xf32>
    %116 = vector.shape_cast %115 : vector<1x1x2x128xf32> to vector<2x128xf32>
    %117 = vector.shape_cast %108 : vector<2x128xf32> to vector<1x1x2x128xf32>
    tpu.vector_store %arg4[%c0_12, %c2, %c0_13, %c0_14], %117 {strides = array<i32>} : memref<1x4x2x128xf32, #tpu.memory_space<vmem>>, vector<1x1x2x128xf32>,
    %cst_15 = arith.constant 1.000000e+00 : f32
    %118 = vector.broadcast %cst_15 : f32 to vector<2x128xf32>
    %c0_16 = arith.constant 0 : index
    %c3 = arith.constant 3 : index
    %c0_17 = arith.constant 0 : index
    %c0_18 = arith.constant 0 : index
    %119 = vector.load %arg4[%c0_16, %c3, %c0_17, %c0_18] : memref<1x4x2x128xf32, #tpu.memory_space<vmem>>, vector<1x1x2x128xf32>
    %120 = vector.shape_cast %119 : vector<1x1x2x128xf32> to vector<2x128xf32>
    %121 = vector.shape_cast %118 : vector<2x128xf32> to vector<1x1x2x128xf32>
    tpu.vector_store %arg4[%c0_16, %c3, %c0_17, %c0_18], %121 {strides = array<i32>} : memref<1x4x2x128xf32, #tpu.memory_space<vmem>>, vector<1x1x2x128xf32>,
    %122 = vector.broadcast %32 : f32 to vector<2x128xf32>
    %123 = arith.mulf %122, %92 : vector<2x128xf32>
    %124 = vector.broadcast %35 : f32 to vector<2x128xf32>
    %125 = arith.mulf %124, %100 : vector<2x128xf32>
    %126 = arith.addf %123, %125 : vector<2x128xf32>
    %127 = vector.broadcast %38 : f32 to vector<2x128xf32>
    %128 = arith.mulf %127, %108 : vector<2x128xf32>
    %129 = arith.addf %126, %128 : vector<2x128xf32>
    %130 = vector.broadcast %41 : f32 to vector<2x128xf32>
    %131 = arith.addf %129, %130 : vector<2x128xf32>
    %132 = vector.broadcast %44 : f32 to vector<2x128xf32>
    %133 = arith.mulf %132, %92 : vector<2x128xf32>
    %134 = vector.broadcast %47 : f32 to vector<2x128xf32>
    %135 = arith.mulf %134, %100 : vector<2x128xf32>
    %136 = arith.addf %133, %135 : vector<2x128xf32>
    %137 = vector.broadcast %50 : f32 to vector<2x128xf32>
    %138 = arith.mulf %137, %108 : vector<2x128xf32>
    %139 = arith.addf %136, %138 : vector<2x128xf32>
    %140 = vector.broadcast %53 : f32 to vector<2x128xf32>
    %141 = arith.addf %139, %140 : vector<2x128xf32>
    %142 = vector.broadcast %56 : f32 to vector<2x128xf32>
    %143 = arith.mulf %142, %92 : vector<2x128xf32>
    %144 = vector.broadcast %59 : f32 to vector<2x128xf32>
    %145 = arith.mulf %144, %100 : vector<2x128xf32>
    %146 = arith.addf %143, %145 : vector<2x128xf32>
    %147 = vector.broadcast %62 : f32 to vector<2x128xf32>
    %148 = arith.mulf %147, %108 : vector<2x128xf32>
    %149 = arith.addf %146, %148 : vector<2x128xf32>
    %150 = vector.broadcast %65 : f32 to vector<2x128xf32>
    %151 = arith.addf %149, %150 : vector<2x128xf32>
    %cst_19 = arith.constant 1.000000e-07 : f32
    %152 = vector.broadcast %cst_19 : f32 to vector<2x128xf32>
    %153 = arith.addf %151, %152 : vector<2x128xf32>
    %154 = tpu.reciprocal %153 : vector<2x128xf32> -> vector<2x128xf32>
    %155 = arith.mulf %131, %154 : vector<2x128xf32>
    %cst_20 = arith.constant 0.13333334 : f32
    %156 = vector.broadcast %cst_20 : f32 to vector<2x128xf32>
    %157 = arith.mulf %155, %156 : vector<2x128xf32>
    %cst_21 = arith.constant 1.000000e+00 : f32
    %158 = vector.broadcast %cst_21 : f32 to vector<2x128xf32>
    %159 = arith.subf %157, %158 : vector<2x128xf32>
    %c0_22 = arith.constant 0 : index
    %c0_23 = arith.constant 0 : index
    %c0_24 = arith.constant 0 : index
    %c0_25 = arith.constant 0 : index
    %160 = vector.load %arg5[%c0_22, %c0_23, %c0_24, %c0_25] : memref<1x2x2x128xf32, #tpu.memory_space<vmem>>, vector<1x1x2x128xf32>
    %161 = vector.shape_cast %160 : vector<1x1x2x128xf32> to vector<2x128xf32>
    %162 = vector.shape_cast %159 : vector<2x128xf32> to vector<1x1x2x128xf32>
    tpu.vector_store %arg5[%c0_22, %c0_23, %c0_24, %c0_25], %162 {strides = array<i32>} : memref<1x2x2x128xf32, #tpu.memory_space<vmem>>, vector<1x1x2x128xf32>,
    %163 = arith.mulf %141, %154 : vector<2x128xf32>
    %cst_26 = arith.constant 0.13333334 : f32
    %164 = vector.broadcast %cst_26 : f32 to vector<2x128xf32>
    %165 = arith.mulf %163, %164 : vector<2x128xf32>
    %cst_27 = arith.constant 1.000000e+00 : f32
    %166 = vector.broadcast %cst_27 : f32 to vector<2x128xf32>
    %167 = arith.subf %165, %166 : vector<2x128xf32>
    %c0_28 = arith.constant 0 : index
    %c1_29 = arith.constant 1 : index
    %c0_30 = arith.constant 0 : index
    %c0_31 = arith.constant 0 : index
    %168 = vector.load %arg5[%c0_28, %c1_29, %c0_30, %c0_31] : memref<1x2x2x128xf32, #tpu.memory_space<vmem>>, vector<1x1x2x128xf32>
    %169 = vector.shape_cast %168 : vector<1x1x2x128xf32> to vector<2x128xf32>
    %170 = vector.shape_cast %167 : vector<2x128xf32> to vector<1x1x2x128xf32>
    tpu.vector_store %arg5[%c0_28, %c1_29, %c0_30, %c0_31], %170 {strides = array<i32>} : memref<1x2x2x128xf32, #tpu.memory_space<vmem>>, vector<1x1x2x128xf32>,
    return
  }
  func.func @transform_0(%arg0: i32, %arg1: i32) -> i32 {
    %c0_i32 = arith.constant 0 : i32
    %c0_i32_0 = arith.constant 0 : i32
    return %c0_i32 : i32
  }
  func.func @transform_1(%arg0: i32, %arg1: i32) -> (i32, i32, i32) {
    %c0_i32 = arith.constant 0 : i32
    %c0_i32_0 = arith.constant 0 : i32
    return %arg0, %arg1, %c0_i32 : i32, i32, i32
  }
  func.func @transform_2(%arg0: i32, %arg1: i32) -> (i32, i32, i32, i32) {
    %c0_i32 = arith.constant 0 : i32
    %c0_i32_0 = arith.constant 0 : i32
    %c0_i32_1 = arith.constant 0 : i32
    return %arg0, %c0_i32, %arg1, %c0_i32_0 : i32, i32, i32, i32
  }
  func.func @transform_3(%arg0: i32, %arg1: i32) -> (i32, i32, i32, i32) {
    %c0_i32 = arith.constant 0 : i32
    %c0_i32_0 = arith.constant 0 : i32
    %c0_i32_1 = arith.constant 0 : i32
    return %arg0, %c0_i32, %arg1, %c0_i32_0 : i32, i32, i32, i32
  }
}

</mosaic_0001>

<llo_original>
// kernel: tpu_custom_call.1
$region0: #{tpu_custom_call.1}
  #allocation0 [shape = 'u32[]', space=smem, size = 0x4, offset = 0x4, fixed_abs, tag = 'smem constant byte address 0x4 - core index']
  #allocation1 [shape = 'u32[144,128]{1,0:T(1,128)}', space=vmem, size = 0x12000, scoped, tag = 'internal scratch']
  %s0 = inlined_call_operand.hbm [shape: f32[42], index: 0, kind: input, shape index: {}]
  %s1 = inlined_call_operand.hbm [shape: f32[2,2,128], index: 1, kind: input, shape index: {}]
  %s2 = inlined_call_operand.hbm [shape: f32[2,4,2,128], index: 2, kind: output, shape index: {0}]
  %s3 = inlined_call_operand.hbm [shape: f32[2,2,2,128], index: 3, kind: output, shape index: {1}]
  %4 = xla_tuple %s2, %s3
  %s5 = sld [smem:[#allocation0]]
  $region57: #{tpu_custom_call.1} parent=0
    _
  %s7 = ssub.s32 1, %s5
  %s8 = scalar_select 0, %s7, %s5
  $region1: #{tpu_custom_call.1} parent=0
    #allocation2 [shape = 'u8[512]{0}', space=smem, size = 0x200, scoped, tag = 'input window, operand 0, single buffered']
    #allocation3 [shape = 's32[2]{0}', space=sflag, size = 0x8, scoped, tag = 'scoped memory for tpu_custom_call.1']
    #allocation4 [shape = 's32[2]{0}', space=sflag, size = 0x8, scoped, tag = 'scoped memory for tpu_custom_call.1']
    #allocation5 [shape = 's32[2]{0}', space=sflag, size = 0x8, scoped, tag = 'scoped memory for tpu_custom_call.1']
    #allocation6 [shape = 'u8[2048]{0}', space=vmem, size = 0x800, scoped, tag = 'input window, operand 1']
    #allocation7 [shape = 'u8[8192]{0}', space=vmem, size = 0x2000, scoped, tag = 'output window, operand 0']
    #allocation8 [shape = 'u8[4096]{0}', space=vmem, size = 0x1000, scoped, tag = 'output window, operand 1']
    #allocation9 [shape = 's32[2]{0}', space=sflag, size = 0x8, scoped, tag = 'scoped memory for tpu_custom_call.1']
    %9 = vsyncpa [#allocation5], 0
    %10 = vsyncpa [#allocation3], 0
    %s11 = scalar_lea.sflag [#allocation3], 1
    %12 = vsyncpa %s11, 0
    %13 = vsyncpa [#allocation4], 0
    %s14 = scalar_lea.sflag [#allocation4], 1
    %15 = vsyncpa %s14, 0
    %16 = vsyncpa [#allocation9], 0
    %s17 = scalar_lea.sflag [#allocation9], 1
    %18 = vsyncpa %s17, 0
    loop: start=0, step=1, limit=4
    $region2: #{tpu_custom_call.1} parent=1 // loop_pre_header
      _
    $region3: #{tpu_custom_call.1} parent=1 // loop_header
      %s20 = sphi 0, %s24
      %p21 = scmp.ge.s32.totalorder %s20, 4
      %s27 = sphi 0, %s39
      %s28 = sphi 0, %s35
      %s29 = sphi 0, %s27
      %s30 = sphi 0, %s28
      %s31 = sphi 0, %s29
      %s32 = sphi 0, %s30
      %s40 = sphi 0, %s40
      %s42 = sphi 0, %s40
      %s43 = sphi 0, %s42
      %s57 = sphi 0, %s43
      %s65 = sphi 0, %s67
      %s68 = sphi 0, %s65
      %s69 = sphi 0, %s68
      %s85 = sphi 0, %s69
      %s93 = sphi 0, %s95
      %s96 = sphi 0, %s93
      %s97 = sphi 0, %s96
      %s113 = sphi 0, %s97
      %s121 = sphi 0, %s123
      %s124 = sphi 0, %s121
      %s125 = sphi 0, %s124
      %s141 = sphi 0, %s125
    $region4: #{tpu_custom_call.1} parent=1 // loop_header_branch
      %23 = sbr.rel (%p21) target = $region8
    $region5: #{tpu_custom_call.1} parent=1 // loop_body
      %s25 = ssub.s32 %s20, 1
      %s26 = ssub.s32 %s20, 2
      %s33 = sadd.s32 1, %s28
      %p34 = scmp.ge.s32.totalorder %s33, 1
      %s35 = scalar_select %p34, 0, %s33
      %s36 = sadd.s32 1, %s27
      %s37 = scalar_select %p34, %s36, %s27
      %p38 = scmp.ge.s32.totalorder %s37, 2
      %s39 = scalar_select %p38, 0, %s37
      %s41 = sadd.s32 %s40, 1
      %p44 = scmp.eq.s32.totalorder %s20, 1
      %p45 = scmp.ne.s32.totalorder %s40, %s42
      %p46 = scmp.eq.s32.totalorder %s20, 0
      %p47 = por %p45, %p46
      %p48 = scmp.ne.s32.totalorder %s40, %s42
      %p49 = scmp.eq.s32.totalorder %s25, 1
      %p50 = por %p48, %p49
      %p51 = scmp.ne.s32.totalorder %s42, %s43
      %p52 = scmp.eq.s32.totalorder %s25, 0
      %p53 = por %p51, %p52
      %p54 = scmp.ne.s32.totalorder %s42, %s43
      %p55 = scmp.eq.s32.totalorder %s26, 1
      %p56 = por %p54, %p55
      %p58 = scmp.ne.s32.totalorder %s43, %s57
      %p59 = scmp.eq.s32.totalorder %s26, 0
      %p60 = por %p58, %p59
      %s61 = ssub.s32 %s27, %s39
      %s62 = ssub.s32 %s28, %s35
      %s63 = sor.u32 %s61, %s62
      %p64 = scmp.eq.s32.totalorder %s63, 0
      %s66 = sadd.s32 %s65, 1
      %s67 = scalar_select %p64, %s65, %s66
      %p70 = pneg %p64
      %p71 = scmp.eq.s32.totalorder %s20, 1
      %p72 = por %p70, %p71
      %p73 = scmp.ne.s32.totalorder %s65, %s68
      %p74 = scmp.eq.s32.totalorder %s20, 0
      %p75 = por %p73, %p74
      %p76 = scmp.ne.s32.totalorder %s65, %s68
      %p77 = scmp.eq.s32.totalorder %s25, 1
      %p78 = por %p76, %p77
      %p79 = scmp.ne.s32.totalorder %s68, %s69
      %p80 = scmp.eq.s32.totalorder %s25, 0
      %p81 = por %p79, %p80
      %p82 = scmp.ne.s32.totalorder %s68, %s69
      %p83 = scmp.eq.s32.totalorder %s26, 1
      %p84 = por %p82, %p83
      %p86 = scmp.ne.s32.totalorder %s69, %s85
      %p87 = scmp.eq.s32.totalorder %s26, 0
      %p88 = por %p86, %p87
      %s89 = ssub.s32 %s27, %s39
      %s90 = ssub.s32 %s28, %s35
      %s91 = sor.u32 %s89, %s90
      %p92 = scmp.eq.s32.totalorder %s91, 0
      %s94 = sadd.s32 %s93, 1
      %s95 = scalar_select %p92, %s93, %s94
      %p98 = pneg %p92
      %p99 = scmp.eq.s32.totalorder %s20, 1
      %p100 = por %p98, %p99
      %p101 = scmp.ne.s32.totalorder %s93, %s96
      %p102 = scmp.eq.s32.totalorder %s20, 0
      %p103 = por %p101, %p102
      %p104 = scmp.ne.s32.totalorder %s93, %s96
      %p105 = scmp.eq.s32.totalorder %s25, 1
      %p106 = por %p104, %p105
      %p107 = scmp.ne.s32.totalorder %s96, %s97
      %p108 = scmp.eq.s32.totalorder %s25, 0
      %p109 = por %p107, %p108
      %p110 = scmp.ne.s32.totalorder %s96, %s97
      %p111 = scmp.eq.s32.totalorder %s26, 1
      %p112 = por %p110, %p111
      %p114 = scmp.ne.s32.totalorder %s97, %s113
      %p115 = scmp.eq.s32.totalorder %s26, 0
      %p116 = por %p114, %p115
      %s117 = ssub.s32 %s27, %s39
      %s118 = ssub.s32 %s28, %s35
      %s119 = sor.u32 %s117, %s118
      %p120 = scmp.eq.s32.totalorder %s119, 0
      %s122 = sadd.s32 %s121, 1
      %s123 = scalar_select %p120, %s121, %s122
      %p126 = pneg %p120
      %p127 = scmp.eq.s32.totalorder %s20, 1
      %p128 = por %p126, %p127
      %p129 = scmp.ne.s32.totalorder %s121, %s124
      %p130 = scmp.eq.s32.totalorder %s20, 0
      %p131 = por %p129, %p130
      %p132 = scmp.ne.s32.totalorder %s121, %s124
      %p133 = scmp.eq.s32.totalorder %s25, 1
      %p134 = por %p132, %p133
      %p135 = scmp.ne.s32.totalorder %s124, %s125
      %p136 = scmp.eq.s32.totalorder %s25, 0
      %p137 = por %p135, %p136
      %p138 = scmp.ne.s32.totalorder %s124, %s125
      %p139 = scmp.eq.s32.totalorder %s26, 1
      %p140 = por %p138, %p139
      %p142 = scmp.ne.s32.totalorder %s125, %s141
      %p143 = scmp.eq.s32.totalorder %s26, 0
      %p144 = por %p142, %p143
      %p145 = scmp.le.s32.totalorder 1, %s20
      %p146 = scmp.lt.s32.totalorder %s20, 3
      %p147 = pnand %p145, %p146
      %p148 = pneg %p147
      // Predicated region
      $region9: #{tpu_custom_call.1} parent=5 // pred_check
        _
      $region10: #{tpu_custom_call.1} parent=5 // pred_check_branch
        %150 = sbr.rel (%p147) target = $region12
      $region11: #{tpu_custom_call.1} parent=5 // pred_region
        %s151 = ssub.s32 %s20, 1
        // Predicated region
        $region13: #{tpu_custom_call.1} parent=11 // pred_check
          %p152 = pneg %p53
        $region14: #{tpu_custom_call.1} parent=11 // pred_check_branch
          %154 = sbr.rel (%p152) target = $region16
        $region15: #{tpu_custom_call.1} parent=11 // pred_region
          %s156 = ssub.s32 16, 16
          %157 = vsyncadd [#allocation5], %s156
          %160 = dma.hbm_to_smem %s0, 16, [#allocation2], [#allocation5]
        $region16: #{tpu_custom_call.1} parent=11 // pred_fallthru
          _
      $region12: #{tpu_custom_call.1} parent=5 // pred_fallthru
        _
      %p161 = scmp.lt.s32.totalorder %s20, 2
      // Predicated region
      $region17: #{tpu_custom_call.1} parent=5 // pred_check
        %p162 = pneg %p161
      $region18: #{tpu_custom_call.1} parent=5 // pred_check_branch
        %164 = sbr.rel (%p162) target = $region20
      $region19: #{tpu_custom_call.1} parent=5 // pred_region
        // Predicated region
        $region21: #{tpu_custom_call.1} parent=19 // pred_check
          %p165 = pneg %p75
        $region22: #{tpu_custom_call.1} parent=19 // pred_check_branch
          %167 = sbr.rel (%p165) target = $region24
        $region23: #{tpu_custom_call.1} parent=19 // pred_region
          %s168 = sand.u32 %s65, 1
          %s169 = scalar_lea.sflag [#allocation3], %s168
          %s170 = sand.u32 %s65, 1
          %s171 = smul.addr %s170, 2
          %s172 = scalar_lea.vmem [#allocation6], %s171
          %s174 = ssub.s32 32, 32
          %175 = vsyncadd %s169, %s174
          %s176 = sadd.s32 %s28, %s27
          %s177 = smul.addr %s176, 32
          %s178 = scalar_lea.hbm %s1, %s177
          %s180 = sshll.u32 %s172, 4
          %s181 = int_to_ptr.vmem [resolvable:$true] %s180
          %183 = dma.hbm_to_vmem [thread:$0]  %s178, 32, %s181, %s169
        $region24: #{tpu_custom_call.1} parent=19 // pred_fallthru
          _
      $region20: #{tpu_custom_call.1} parent=5 // pred_fallthru
        _
      %p184 = scmp.le.s32.totalorder 1, %s20
      %p185 = scmp.lt.s32.totalorder %s20, 3
      %p186 = pnand %p184, %p185
      %p187 = pneg %p186
      // Predicated region
      $region25: #{tpu_custom_call.1} parent=5 // pred_check
        _
      $region26: #{tpu_custom_call.1} parent=5 // pred_check_branch
        %189 = sbr.rel (%p186) target = $region28
      $region27: #{tpu_custom_call.1} parent=5 // pred_region
        %s190 = ssub.s32 %s20, 1
        // Predicated region
        $region29: #{tpu_custom_call.1} parent=27 // pred_check
          %p191 = pneg %p53
        $region30: #{tpu_custom_call.1} parent=27 // pred_check_branch
          %193 = sbr.rel (%p191) target = $region32
        $region31: #{tpu_custom_call.1} parent=27 // pred_region
          %194 = dma.done [#allocation5], 16
        $region32: #{tpu_custom_call.1} parent=27 // pred_fallthru
          _
        %s195 = sand.u32 %s68, 1
        %s196 = scalar_lea.sflag [#allocation3], %s195
        %s197 = sand.u32 %s68, 1
        %s198 = smul.addr %s197, 2
        %s199 = scalar_lea.vmem [#allocation6], %s198
        // Predicated region
        $region33: #{tpu_custom_call.1} parent=27 // pred_check
          %p200 = pneg %p81
        $region34: #{tpu_custom_call.1} parent=27 // pred_check_branch
          %202 = sbr.rel (%p200) target = $region36
        $region35: #{tpu_custom_call.1} parent=27 // pred_region
          %203 = dma.done %s196, 32
        $region36: #{tpu_custom_call.1} parent=27 // pred_fallthru
          _
        %204 = sfence
        %p205 = pneg %p53
        %p206 = pneg %p50
        %s207 = sand.u32 %s68, 1
        %s208 = scalar_lea.sflag [#allocation3], %s207
        %s209 = sand.u32 %s68, 1
        %s210 = smul.addr %s209, 2
        %s211 = scalar_lea.vmem [#allocation6], %s210
        %p212 = pneg %p81
        %p213 = pneg %p78
        %p214 = pneg %p109
        %p215 = pneg %p106
        %s216 = sand.u32 %s96, 1
        %s217 = scalar_lea.sflag [#allocation4], %s216
        %s218 = sand.u32 %s96, 1
        %s219 = smul.addr %s218, 8
        %s220 = scalar_lea.vmem [#allocation7], %s219
        %p221 = pneg %p137
        %p222 = pneg %p134
        %s223 = sand.u32 %s124, 1
        %s224 = scalar_lea.sflag [#allocation9], %s223
        %s225 = sand.u32 %s124, 1
        %s226 = smul.addr %s225, 4
        %s227 = scalar_lea.vmem [#allocation8], %s226
        %v228 = vld [vmem:[%s199] sm:$0x3]
        %s229 = smul.u32 %s29, 21
        %s230 = sld [smem:[#allocation2 + %s229]]
        %s231 = sadd.s32 %s229, 1
        %s232 = sld [smem:[#allocation2 + %s231]]
        %s233 = sadd.s32 %s229, 2
        %s234 = sld [smem:[#allocation2 + %s233]]
        %s235 = sadd.s32 %s229, 3
        %s236 = sld [smem:[#allocation2 + %s235]]
        %s237 = sadd.s32 %s229, 4
        %s238 = sld [smem:[#allocation2 + %s237]]
        %s239 = sadd.s32 %s229, 5
        %s240 = sld [smem:[#allocation2 + %s239]]
        %s241 = sadd.s32 %s229, 6
        %s242 = sld [smem:[#allocation2 + %s241]]
        %s243 = sadd.s32 %s229, 7
        %s244 = sld [smem:[#allocation2 + %s243]]
        %s245 = sadd.s32 %s229, 8
        %s246 = sld [smem:[#allocation2 + %s245]]
        %s247 = sadd.s32 %s229, 9
        %s248 = sld [smem:[#allocation2 + %s247]]
        %s249 = sadd.s32 %s229, 10
        %s250 = sld [smem:[#allocation2 + %s249]]
        %s251 = sadd.s32 %s229, 11
        %s252 = sld [smem:[#allocation2 + %s251]]
        %s253 = sadd.s32 %s229, 12
        %s254 = sld [smem:[#allocation2 + %s253]]
        %s255 = sadd.s32 %s229, 13
        %s256 = sld [smem:[#allocation2 + %s255]]
        %s257 = sadd.s32 %s229, 14
        %s258 = sld [smem:[#allocation2 + %s257]]
        %s259 = sadd.s32 %s229, 15
        %s260 = sld [smem:[#allocation2 + %s259]]
        %s261 = sadd.s32 %s229, 16
        %s262 = sld [smem:[#allocation2 + %s261]]
        %s263 = sadd.s32 %s229, 17
        %s264 = sld [smem:[#allocation2 + %s263]]
        %s265 = sadd.s32 %s229, 18
        %s266 = sld [smem:[#allocation2 + %s265]]
        %s267 = sadd.s32 %s229, 19
        %s268 = sld [smem:[#allocation2 + %s267]]
        %s269 = sadd.s32 %s229, 20
        %s270 = sld [smem:[#allocation2 + %s269]]
        %v271 = vlaneseq
        %v272 = vshrl.u32 %v271, 7
        %v273 = vcvt.s32.f32 %v272
        %v274 = vlaneseq
        %v275 = vand.u32 %v274, 127
        %v276 = vcvt.s32.f32 %v275
        %s277 = smul.u32 %s30, 256
        %s278 = scvt.s32.f32 %s277
        %v279 = vmul.f32 %v273, 128.0
        %v280 = vstv %s278
        %v281 = vadd.f32 %v280, %v279
        %v282 = vadd.f32 %v281, %v276
        %v283 = vadd.f32 %v282, 0.5
        %v284 = vmul.f32 %v283, 0.0625
        %v285 = vfloor.f32 %v284
        %v286 = vmul.f32 %v285, 16.0
        %v287 = vsub.f32 %v282, %v286
        %v288 = vstv %s230
        %v289 = vmul.f32 %v288, %v287
        %v290 = vstv %s232
        %v291 = vmul.f32 %v290, %v285
        %v292 = vadd.f32 %v289, %v291
        %v293 = vstv %s234
        %v294 = vadd.f32 %v292, %v293
        %v295 = vmul.f32 %v228, %v294
        %v296 = vstv %s236
        %v297 = vmul.f32 %v296, %v287
        %v298 = vstv %s238
        %v299 = vmul.f32 %v298, %v285
        %v300 = vadd.f32 %v297, %v299
        %v301 = vstv %s240
        %v302 = vadd.f32 %v300, %v301
        %v303 = vmul.f32 %v228, %v302
        %v304 = vstv %s242
        %v305 = vmul.f32 %v304, %v287
        %v306 = vstv %s244
        %v307 = vmul.f32 %v306, %v285
        %v308 = vadd.f32 %v305, %v307
        %v309 = vstv %s246
        %v310 = vadd.f32 %v308, %v309
        %v311 = vmul.f32 %v228, %v310
        %312 = vst [vmem:[%s220] sm:$0x3] %v295
        %s313 = scalar_lea.vmem %s220, 2 [#allocation7]
        %314 = vst [vmem:[%s313] sm:$0x3] %v303
        %s315 = scalar_lea.vmem %s220, 4 [#allocation7]
        %316 = vst [vmem:[%s315] sm:$0x3] %v311
        %s317 = scalar_lea.vmem %s220, 6 [#allocation7]
        %318 = vst [vmem:[%s317] sm:$0x3] 1.0
        %v319 = vstv %s248
        %v320 = vmul.f32 %v319, %v295
        %v321 = vstv %s250
        %v322 = vmul.f32 %v321, %v303
        %v323 = vadd.f32 %v320, %v322
        %v324 = vstv %s252
        %v325 = vmul.f32 %v324, %v311
        %v326 = vadd.f32 %v323, %v325
        %v327 = vstv %s254
        %v328 = vadd.f32 %v326, %v327
        %v329 = vstv %s256
        %v330 = vmul.f32 %v329, %v295
        %v331 = vstv %s258
        %v332 = vmul.f32 %v331, %v303
        %v333 = vadd.f32 %v330, %v332
        %v334 = vstv %s260
        %v335 = vmul.f32 %v334, %v311
        %v336 = vadd.f32 %v333, %v335
        %v337 = vstv %s262
        %v338 = vadd.f32 %v336, %v337
        %v339 = vstv %s264
        %v340 = vmul.f32 %v339, %v295
        %v341 = vstv %s266
        %v342 = vmul.f32 %v341, %v303
        %v343 = vadd.f32 %v340, %v342
        %v344 = vstv %s268
        %v345 = vmul.f32 %v344, %v311
        %v346 = vadd.f32 %v343, %v345
        %v347 = vstv %s270
        %v348 = vadd.f32 %v346, %v347
        %v349 = vadd.f32 %v348, 1e-07
        %v350 = vrcp.pop %v349
        %v351 = vmul.f32 %v328, %v350
        %v352 = vmul.f32 %v351, 0.13333334
        %v353 = vsub.f32 %v352, 1.0
        %354 = vst [vmem:[%s227] sm:$0x3] %v353
        %v355 = vmul.f32 %v338, %v350
        %v356 = vmul.f32 %v355, 0.13333334
        %v357 = vsub.f32 %v356, 1.0
        %s358 = scalar_lea.vmem %s227, 2 [#allocation8]
        %359 = vst [vmem:[%s358] sm:$0x3] %v357
        %s360 = sand.u32 %s96, 1
        %s361 = scalar_lea.sflag [#allocation4], %s360
        %s362 = sand.u32 %s96, 1
        %s363 = smul.addr %s362, 8
        %s364 = scalar_lea.vmem [#allocation7], %s363
        %s365 = sand.u32 %s124, 1
        %s366 = scalar_lea.sflag [#allocation9], %s365
        %s367 = sand.u32 %s124, 1
        %s368 = smul.addr %s367, 4
        %s369 = scalar_lea.vmem [#allocation8], %s368
        // Predicated region
        $region37: #{tpu_custom_call.1} parent=27 // pred_check
          %p370 = pneg %p106
        $region38: #{tpu_custom_call.1} parent=27 // pred_check_branch
          %372 = sbr.rel (%p370) target = $region40
        $region39: #{tpu_custom_call.1} parent=27 // pred_region
          %s374 = ssub.s32 128, 128
          %375 = vsyncadd %s361, %s374
          %s376 = smul.addr %s29, 4
          %s377 = sadd.s32 %s30, %s376
          %s378 = smul.addr %s377, 32
          %s379 = scalar_lea.hbm %s2, %s378
          %s380 = sshll.u32 %s364, 4
          %s381 = int_to_ptr.vmem [resolvable:$true] %s380
          %386 = dma.vmem_to_hbm [thread:$0]  %s381, 128, %s379, %s361, 32, 32, 2
        $region40: #{tpu_custom_call.1} parent=27 // pred_fallthru
          _
        // Predicated region
        $region41: #{tpu_custom_call.1} parent=27 // pred_check
          %p387 = pneg %p134
        $region42: #{tpu_custom_call.1} parent=27 // pred_check_branch
          %389 = sbr.rel (%p387) target = $region44
        $region43: #{tpu_custom_call.1} parent=27 // pred_region
          %s391 = ssub.s32 64, 64
          %392 = vsyncadd %s366, %s391
          %s393 = smul.addr %s29, 2
          %s394 = sadd.s32 %s30, %s393
          %s395 = smul.addr %s394, 32
          %s396 = scalar_lea.hbm %s3, %s395
          %s397 = sshll.u32 %s369, 4
          %s398 = int_to_ptr.vmem [resolvable:$true] %s397
          %403 = dma.vmem_to_hbm [thread:$0]  %s398, 64, %s396, %s366, 32, 32, 2
        $region44: #{tpu_custom_call.1} parent=27 // pred_fallthru
          _
      $region28: #{tpu_custom_call.1} parent=5 // pred_fallthru
        _
      %p404 = scmp.le.s32.totalorder 2, %s20
      // Predicated region
      $region45: #{tpu_custom_call.1} parent=5 // pred_check
        %p405 = pneg %p404
      $region46: #{tpu_custom_call.1} parent=5 // pred_check_branch
        %407 = sbr.rel (%p405) target = $region48
      $region47: #{tpu_custom_call.1} parent=5 // pred_region
        %s408 = ssub.s32 %s20, 2
        // Predicated region
        $region49: #{tpu_custom_call.1} parent=47 // pred_check
          %p409 = pneg %p112
        $region50: #{tpu_custom_call.1} parent=47 // pred_check_branch
          %411 = sbr.rel (%p409) target = $region52
        $region51: #{tpu_custom_call.1} parent=47 // pred_region
          %s412 = sand.u32 %s97, 1
          %s413 = scalar_lea.sflag [#allocation4], %s412
          %s414 = sand.u32 %s97, 1
          %s415 = smul.addr %s414, 8
          %s416 = scalar_lea.vmem [#allocation7], %s415
          %417 = dma.done %s413, 128
        $region52: #{tpu_custom_call.1} parent=47 // pred_fallthru
          _
        // Predicated region
        $region53: #{tpu_custom_call.1} parent=47 // pred_check
          %p418 = pneg %p140
        $region54: #{tpu_custom_call.1} parent=47 // pred_check_branch
          %420 = sbr.rel (%p418) target = $region56
        $region55: #{tpu_custom_call.1} parent=47 // pred_region
          %s421 = sand.u32 %s125, 1
          %s422 = scalar_lea.sflag [#allocation9], %s421
          %s423 = sand.u32 %s125, 1
          %s424 = smul.addr %s423, 4
          %s425 = scalar_lea.vmem [#allocation8], %s424
          %426 = dma.done %s422, 64
        $region56: #{tpu_custom_call.1} parent=47 // pred_fallthru
          _
      $region48: #{tpu_custom_call.1} parent=5 // pred_fallthru
        _
    $region6: #{tpu_custom_call.1} parent=1 // loop_footer
      %s24 = sadd.s32 1, %s20
    $region7: #{tpu_custom_call.1} parent=1 // loop_footer_branch
      %19 = sbr.rel target = $region3
    $region8: #{tpu_custom_call.1} parent=1 // loop_exit
      _
    %427 = vsyncpa [#allocation3], 1
    %s428 = scalar_lea.sflag [#allocation3], 1
    %429 = vsyncpa %s428, 1
    %430 = vsyncpa [#allocation4], 1
    %s431 = scalar_lea.sflag [#allocation4], 1
    %432 = vsyncpa %s431, 1
    %433 = vsyncpa [#allocation9], 1
    %s434 = scalar_lea.sflag [#allocation9], 1
    %435 = vsyncpa %s434, 1
    %436 = vsyncpa [#allocation5], 1
    %s437 = scalar_lea.sflag [#allocation5], 1
    %438 = vsyncpa %s437, 1

</llo_original>
